<compile_context>
chip_gen: v6e
topology: v6e:2x2x1
jax: 0.10.0
libtpu: 0.0.40
codegen_flags: <defaults>
</compile_context>

<pallas_src>
import functools

import jax
import jax.numpy as jnp
import numpy as np
from jax.experimental import pallas as pl
from jax.experimental.pallas import tpu as pltpu


# Synthetic ActDims (Lux-like action dimensions).
class ActDims:
    robot_act = 6
    direction = 5
    resource = 5
    repeat = 2


def _round_up(x, m):
    return ((x + m - 1) // m) * m


def action_preprocess_kernel(w1_ref,       # SMEM (Q,) f32 : conv1 weights
                             islab_ref,    # (4Q, TN) int8 : offset ids
                             fslab_ref,    # (FR, TN) f32  : amount | n | ind | 0
                             tableT_ref,   # (E, VP) f32   : scaled emb tables
                             w2f_ref,      # (E, FR) f32   : scalar-path weights
                             out_ref,      # (E, TN) f32
                             *, Q):
    TN = out_ref.shape[1]
    VP = tableT_ref.shape[1]

    ids = islab_ref[...].astype(jnp.int32)                       # (4Q, TN)
    iota = jax.lax.broadcasted_iota(jnp.int32, (VP, TN), 0)      # sublane iota

    A = jnp.zeros((VP, TN), jnp.float32)                         # weighted one-hot counts
    for q in range(Q):                                           # static unroll; Q is small
        t = ids[q:q + 1, :]
        d = ids[Q + q:Q + q + 1, :]
        r = ids[2 * Q + q:2 * Q + q + 1, :]
        rp = ids[3 * Q + q:3 * Q + q + 1, :]
        # Vocab sub-ranges are disjoint (offsets baked + clamped in the
        # wrapper), so the OR of the four one-hots equals their sum.
        onehot = (t == iota) | (d == iota) | (r == iota) | (rp == iota)
        A = A + w1_ref[q] * onehot.astype(jnp.float32)

    f = fslab_ref[...]                                           # (FR, TN)
    # Both the embedding path and the amount/n/bias path run on the MXU.
    z = (jnp.dot(tableT_ref[...], A, preferred_element_type=jnp.float32)
         + jnp.dot(w2f_ref[...], f, preferred_element_type=jnp.float32))
    y = jnp.where(z >= 0.0, z, 0.01 * z)                         # LeakyReLU(0.01)
    ind = f[2 * Q:2 * Q + 1, :]                                  # 0/1 indicator row
    out_ref[...] = (y * ind).astype(out_ref.dtype)


def action_preprocess_forward(params, feats, *, emb_dim, action_queue_size, tile_n=1024):
    ind = feats['unit_indicator']
    B, H, W = ind.shape
    Q = action_queue_size
    E = emb_dim
    HW = H * W
    tile_n = max(128, min(int(tile_n), _round_up(HW, 128)))
    HWp = _round_up(HW, tile_n)

    off_type = 0
    off_dir = off_type + ActDims.robot_act
    off_res = off_dir + ActDims.direction
    off_rep = off_res + ActDims.resource
    V = off_rep + ActDims.repeat
    VP = _round_up(V, 8)
    FR = _round_up(2 * Q + 1, 8)                 # float-slab rows (padded to 8)

    def to_qn(x):                                # (B,H,W,Q) -> (B,Q,HW), lane-dense
        return jnp.transpose(x.reshape(B, HW, Q), (0, 2, 1))

    # Int slab: offsets baked in; all values < 2**7 so int8 is safe in HBM.
    t = to_qn(jnp.clip(feats['type'].astype(jnp.int32), 0, ActDims.robot_act - 1)) + off_type
    d = to_qn(jnp.clip(feats['direction'].astype(jnp.int32), 0, ActDims.direction - 1)) + off_dir
    r = to_qn(jnp.clip(feats['resource'].astype(jnp.int32), 0, ActDims.resource - 1)) + off_res
    rp = to_qn((feats['repeat'] != 0).astype(jnp.int32)) + off_rep
    islab = jnp.concatenate([t, d, r, rp], axis=1).astype(jnp.int8)       # (B,4Q,HW)
    islab = jnp.pad(islab, ((0, 0), (0, 0), (0, HWp - HW)))

    # Float slab: amount rows, n rows, indicator row (0/1), zero padding rows.
    amt = to_qn(feats['amount'].astype(jnp.float32))
    n_f = to_qn(feats['n'].astype(jnp.float32))
    ind_f = (ind != 0).astype(jnp.float32).reshape(B, 1, HW)
    pad_rows = jnp.zeros((B, FR - (2 * Q + 1), HW), jnp.float32)
    fslab = jnp.concatenate([amt, n_f, ind_f, pad_rows], axis=1)          # (B,FR,HW)
    fslab = jnp.pad(fslab, ((0, 0), (0, 0), (0, HWp - HW)))

    # Conv parameters (glue / parameter setup).
    w1 = params['conv1_w'].reshape(Q).astype(jnp.float32)     # Conv3d(1,1,(Q,1,1))
    b1 = params['conv1_b'].reshape(()).astype(jnp.float32)
    w2 = params['conv2_w'].reshape(6).astype(jnp.float32)     # Conv3d(1,1,(1,1,6))
    b2 = params['conv2_b'].reshape(()).astype(jnp.float32)
    c_type, c_dir, c_res, c_amt, c_rep, c_n = (w2[i] for i in range(6))
    bias_total = b2 + b1 * jnp.sum(w2)

    # Combined (transposed) embedding table with per-source conv2 weights folded in.
    table = jnp.zeros((VP, E), jnp.float32)
    table = table.at[off_type:off_type + ActDims.robot_act].set(c_type * params['type_emb'])
    table = table.at[off_dir:off_dir + ActDims.direction].set(c_dir * params['direction_emb'])
    table = table.at[off_res:off_res + ActDims.resource].set(c_res * params['resource_emb'])
    table = table.at[off_rep:off_rep + ActDims.repeat].set(c_rep * params['repeat_emb'])
    tableT = table.T                                                      # (E, VP)

    # Scalar-path (amount / n / bias) weights, also pushed onto the MXU.
    w2f = jnp.zeros((E, FR), jnp.float32)
    w2f = w2f.at[:, 0:Q].set(jnp.broadcast_to(c_amt * w1, (E, Q)))
    w2f = w2f.at[:, Q:2 * Q].set(jnp.broadcast_to(c_n * w1, (E, Q)))
    w2f = w2f.at[:, 2 * Q].set(bias_total)   # gated by the 0/1 indicator row

    kernel = functools.partial(action_preprocess_kernel, Q=Q)

    out = pl.pallas_call(
        kernel,
        out_shape=jax.ShapeDtypeStruct((B, E, HWp), jnp.float32),
        grid_spec=pl.GridSpec(
            grid=(B, HWp // tile_n),
            in_specs=[
                pl.BlockSpec(memory_space=pltpu.MemorySpace.SMEM),           # w1 scalars
                pl.BlockSpec((None, 4 * Q, tile_n), lambda b, i: (b, 0, i)), # int slab
                pl.BlockSpec((None, FR, tile_n), lambda b, i: (b, 0, i)),    # float slab
                pl.BlockSpec((E, VP), lambda b, i: (0, 0)),                  # tableT
                pl.BlockSpec((E, FR), lambda b, i: (0, 0)),                  # w2f
            ],
            out_specs=pl.BlockSpec((None, E, tile_n), lambda b, i: (b, 0, i)),
        ),
        compiler_params=pltpu.CompilerParams(
            dimension_semantics=("parallel", "parallel")),
    )(w1, islab, fslab, tableT, w2f)

    # (B, E, H, W) directly — no transpose needed (matches PyTorch output layout).
    return out[:, :, :HW].reshape(B, E, H, W)


def reference_forward(params, feats, emb_dim, Q):
    """Pure-JAX mirror of the PyTorch forward (dense masked form)."""
    ind = feats['unit_indicator']
    type_e = params['type_emb'][feats['type']]                        # (B,H,W,Q,E)
    dir_e = params['direction_emb'][feats['direction']]
    res_e = params['resource_emb'][feats['resource']]
    rep_e = params['repeat_emb'][(feats['repeat'] != 0).astype(jnp.int32)]
    amt = jnp.broadcast_to(feats['amount'][..., None], type_e.shape)
    n_ = jnp.broadcast_to(feats['n'][..., None], type_e.shape)
    emb = jnp.stack([type_e, dir_e, res_e, amt, rep_e, n_], axis=-1)  # (B,H,W,Q,E,6)
    w1 = params['conv1_w'].reshape(Q)
    b1 = params['conv1_b'].reshape(())
    w2 = params['conv2_w'].reshape(6)
    b2 = params['conv2_b'].reshape(())
    h1 = jnp.einsum('bhwqes,q->bhwes', emb, w1) + b1
    h2 = jnp.einsum('bhwes,s->bhwe', h1, w2) + b2
    act = jnp.where(h2 >= 0, h2, 0.01 * h2)
    masked = act * (ind[..., None] != 0)
    return jnp.transpose(masked, (0, 3, 1, 2))                        # (B,E,H,W)


if __name__ == "__main__":
    E = 32               # emb_dim
    Q = 8                # action_queue_size
    B, H, W = 2, 6, 6

    key = jax.random.PRNGKey(0)
    ks = jax.random.split(key, 16)
    params = {
        'type_emb': jax.random.normal(ks[0], (ActDims.robot_act, E), jnp.float32),
        'direction_emb': jax.random.normal(ks[1], (ActDims.direction, E), jnp.float32),
        'resource_emb': jax.random.normal(ks[2], (ActDims.resource, E), jnp.float32),
        'repeat_emb': jax.random.normal(ks[3], (ActDims.repeat, E), jnp.float32),
        'conv1_w': 0.3 * jax.random.normal(ks[4], (1, 1, Q, 1, 1), jnp.float32),
        'conv1_b': 0.1 * jax.random.normal(ks[5], (1,), jnp.float32),
        'conv2_w': 0.3 * jax.random.normal(ks[6], (1, 1, 1, 1, 6), jnp.float32),
        'conv2_b': 0.1 * jax.random.normal(ks[7], (1,), jnp.float32),
    }
    feats = {
        'unit_indicator': jax.random.bernoulli(ks[8], 0.5, (B, H, W)),
        'type': jax.random.randint(ks[9], (B, H, W, Q), 0, ActDims.robot_act),
        'direction': jax.random.randint(ks[10], (B, H, W, Q), 0, ActDims.direction),
        'resource': jax.random.randint(ks[11], (B, H, W, Q), 0, ActDims.resource),
        'repeat': jax.random.randint(ks[12], (B, H, W, Q), 0, 3),
        'amount': jax.random.uniform(ks[13], (B, H, W, Q), jnp.float32),
        'n': jax.random.uniform(ks[14], (B, H, W, Q), jnp.float32),
    }

    out = action_preprocess_forward(params, feats, emb_dim=E, action_queue_size=Q)
    out = jax.block_until_ready(out)

    ref = reference_forward(params, feats, E, Q)
    np.testing.assert_allclose(np.asarray(out), np.asarray(ref), rtol=1e-4, atol=1e-4)
    print("KERNEL_OK")
</pallas_src>

<mosaic_0001>
module attributes {stable_mosaic.version = 11 : i64} {
  func.func @action_preprocess_kernel(%arg0: i32, %arg1: i32, %arg2: memref<8xf32, #tpu.memory_space<smem>>, %arg3: memref<1x32x128xi8, #tpu.memory_space<vmem>>, %arg4: memref<1x24x128xf32, #tpu.memory_space<vmem>>, %arg5: memref<32x24xf32, #tpu.memory_space<vmem>>, %arg6: memref<32x24xf32, #tpu.memory_space<vmem>>, %arg7: memref<1x32x128xf32, #tpu.memory_space<vmem>>) attributes {dimension_semantics = [#tpu.dimension_semantics<parallel>, #tpu.dimension_semantics<parallel>], iteration_bounds = array<i64: 2, 1>, scalar_prefetch = 0 : i64, scratch_operands = 0 : i64, tpu.core_type = #tpu.core_type<tc>, window_params = [{transform_indices = @transform_0, window_bounds = array<i64: 8>}, {transform_indices = @transform_1, window_bounds = array<i64: 1, 32, 128>}, {transform_indices = @transform_2, window_bounds = array<i64: 1, 24, 128>}, {pipeline_mode = #tpu.pipeline_mode<synchronous>, transform_indices = @transform_3, window_bounds = array<i64: 32, 24>}, {pipeline_mode = #tpu.pipeline_mode<synchronous>, transform_indices = @transform_4, window_bounds = array<i64: 32, 24>}, {transform_indices = @transform_5, window_bounds = array<i64: 1, 32, 128>}]} {
    %c0 = arith.constant 0 : index
    %c0_0 = arith.constant 0 : index
    %c0_1 = arith.constant 0 : index
    %0 = vector.load %arg3[%c0, %c0_0, %c0_1] : memref<1x32x128xi8, #tpu.memory_space<vmem>>, vector<1x32x128xi8>
    %1 = vector.shape_cast %0 : vector<1x32x128xi8> to vector<32x128xi8>
    %2 = arith.extsi %1 : vector<32x128xi8> to vector<32x128xi32>
    %3 = tpu.iota {dimensions = array<i32: 0>} : vector<24x128xi32>
    %cst = arith.constant 0.000000e+00 : f32
    %4 = vector.broadcast %cst : f32 to vector<24x128xf32>
    %5 = vector.extract_strided_slice %2 {offsets = [0, 0], sizes = [1, 128], strides = [1, 1]} : vector<32x128xi32> to vector<1x128xi32>
    %6 = vector.extract_strided_slice %2 {offsets = [8, 0], sizes = [1, 128], strides = [1, 1]} : vector<32x128xi32> to vector<1x128xi32>
    %7 = vector.extract_strided_slice %2 {offsets = [16, 0], sizes = [1, 128], strides = [1, 1]} : vector<32x128xi32> to vector<1x128xi32>
    %8 = vector.extract_strided_slice %2 {offsets = [24, 0], sizes = [1, 128], strides = [1, 1]} : vector<32x128xi32> to vector<1x128xi32>
    %9 = vector.broadcast %5 : vector<1x128xi32> to vector<24x128xi32>
    %10 = arith.cmpi eq, %9, %3 : vector<24x128xi32>
    %11 = vector.broadcast %6 : vector<1x128xi32> to vector<24x128xi32>
    %12 = arith.cmpi eq, %11, %3 : vector<24x128xi32>
    %13 = arith.ori %10, %12 : vector<24x128xi1>
    %14 = vector.broadcast %7 : vector<1x128xi32> to vector<24x128xi32>
    %15 = arith.cmpi eq, %14, %3 : vector<24x128xi32>
    %16 = arith.ori %13, %15 : vector<24x128xi1>
    %17 = vector.broadcast %8 : vector<1x128xi32> to vector<24x128xi32>
    %18 = arith.cmpi eq, %17, %3 : vector<24x128xi32>
    %19 = arith.ori %16, %18 : vector<24x128xi1>
    %c0_2 = arith.constant 0 : index
    %20 = memref.load %arg2[%c0_2] : memref<8xf32, #tpu.memory_space<smem>>
    %21 = arith.extui %19 : vector<24x128xi1> to vector<24x128xi32>
    %22 = arith.sitofp %21 : vector<24x128xi32> to vector<24x128xf32>
    %23 = vector.broadcast %20 : f32 to vector<24x128xf32>
    %24 = arith.mulf %23, %22 : vector<24x128xf32>
    %25 = arith.addf %4, %24 : vector<24x128xf32>
    %26 = vector.extract_strided_slice %2 {offsets = [1, 0], sizes = [1, 128], strides = [1, 1]} : vector<32x128xi32> to vector<1x128xi32>
    %27 = vector.extract_strided_slice %2 {offsets = [9, 0], sizes = [1, 128], strides = [1, 1]} : vector<32x128xi32> to vector<1x128xi32>
    %28 = vector.extract_strided_slice %2 {offsets = [17, 0], sizes = [1, 128], strides = [1, 1]} : vector<32x128xi32> to vector<1x128xi32>
    %29 = vector.extract_strided_slice %2 {offsets = [25, 0], sizes = [1, 128], strides = [1, 1]} : vector<32x128xi32> to vector<1x128xi32>
    %30 = vector.broadcast %26 : vector<1x128xi32> to vector<24x128xi32>
    %31 = arith.cmpi eq, %30, %3 : vector<24x128xi32>
    %32 = vector.broadcast %27 : vector<1x128xi32> to vector<24x128xi32>
    %33 = arith.cmpi eq, %32, %3 : vector<24x128xi32>
    %34 = arith.ori %31, %33 : vector<24x128xi1>
    %35 = vector.broadcast %28 : vector<1x128xi32> to vector<24x128xi32>
    %36 = arith.cmpi eq, %35, %3 : vector<24x128xi32>
    %37 = arith.ori %34, %36 : vector<24x128xi1>
    %38 = vector.broadcast %29 : vector<1x128xi32> to vector<24x128xi32>
    %39 = arith.cmpi eq, %38, %3 : vector<24x128xi32>
    %40 = arith.ori %37, %39 : vector<24x128xi1>
    %c1 = arith.constant 1 : index
    %41 = memref.load %arg2[%c1] : memref<8xf32, #tpu.memory_space<smem>>
    %42 = arith.extui %40 : vector<24x128xi1> to vector<24x128xi32>
    %43 = arith.sitofp %42 : vector<24x128xi32> to vector<24x128xf32>
    %44 = vector.broadcast %41 : f32 to vector<24x128xf32>
    %45 = arith.mulf %44, %43 : vector<24x128xf32>
    %46 = arith.addf %25, %45 : vector<24x128xf32>
    %47 = vector.extract_strided_slice %2 {offsets = [2, 0], sizes = [1, 128], strides = [1, 1]} : vector<32x128xi32> to vector<1x128xi32>
    %48 = vector.extract_strided_slice %2 {offsets = [10, 0], sizes = [1, 128], strides = [1, 1]} : vector<32x128xi32> to vector<1x128xi32>
    %49 = vector.extract_strided_slice %2 {offsets = [18, 0], sizes = [1, 128], strides = [1, 1]} : vector<32x128xi32> to vector<1x128xi32>
    %50 = vector.extract_strided_slice %2 {offsets = [26, 0], sizes = [1, 128], strides = [1, 1]} : vector<32x128xi32> to vector<1x128xi32>
    %51 = vector.broadcast %47 : vector<1x128xi32> to vector<24x128xi32>
    %52 = arith.cmpi eq, %51, %3 : vector<24x128xi32>
    %53 = vector.broadcast %48 : vector<1x128xi32> to vector<24x128xi32>
    %54 = arith.cmpi eq, %53, %3 : vector<24x128xi32>
    %55 = arith.ori %52, %54 : vector<24x128xi1>
    %56 = vector.broadcast %49 : vector<1x128xi32> to vector<24x128xi32>
    %57 = arith.cmpi eq, %56, %3 : vector<24x128xi32>
    %58 = arith.ori %55, %57 : vector<24x128xi1>
    %59 = vector.broadcast %50 : vector<1x128xi32> to vector<24x128xi32>
    %60 = arith.cmpi eq, %59, %3 : vector<24x128xi32>
    %61 = arith.ori %58, %60 : vector<24x128xi1>
    %c2 = arith.constant 2 : index
    %62 = memref.load %arg2[%c2] : memref<8xf32, #tpu.memory_space<smem>>
    %63 = arith.extui %61 : vector<24x128xi1> to vector<24x128xi32>
    %64 = arith.sitofp %63 : vector<24x128xi32> to vector<24x128xf32>
    %65 = vector.broadcast %62 : f32 to vector<24x128xf32>
    %66 = arith.mulf %65, %64 : vector<24x128xf32>
    %67 = arith.addf %46, %66 : vector<24x128xf32>
    %68 = vector.extract_strided_slice %2 {offsets = [3, 0], sizes = [1, 128], strides = [1, 1]} : vector<32x128xi32> to vector<1x128xi32>
    %69 = vector.extract_strided_slice %2 {offsets = [11, 0], sizes = [1, 128], strides = [1, 1]} : vector<32x128xi32> to vector<1x128xi32>
    %70 = vector.extract_strided_slice %2 {offsets = [19, 0], sizes = [1, 128], strides = [1, 1]} : vector<32x128xi32> to vector<1x128xi32>
    %71 = vector.extract_strided_slice %2 {offsets = [27, 0], sizes = [1, 128], strides = [1, 1]} : vector<32x128xi32> to vector<1x128xi32>
    %72 = vector.broadcast %68 : vector<1x128xi32> to vector<24x128xi32>
    %73 = arith.cmpi eq, %72, %3 : vector<24x128xi32>
    %74 = vector.broadcast %69 : vector<1x128xi32> to vector<24x128xi32>
    %75 = arith.cmpi eq, %74, %3 : vector<24x128xi32>
    %76 = arith.ori %73, %75 : vector<24x128xi1>
    %77 = vector.broadcast %70 : vector<1x128xi32> to vector<24x128xi32>
    %78 = arith.cmpi eq, %77, %3 : vector<24x128xi32>
    %79 = arith.ori %76, %78 : vector<24x128xi1>
    %80 = vector.broadcast %71 : vector<1x128xi32> to vector<24x128xi32>
    %81 = arith.cmpi eq, %80, %3 : vector<24x128xi32>
    %82 = arith.ori %79, %81 : vector<24x128xi1>
    %c3 = arith.constant 3 : index
    %83 = memref.load %arg2[%c3] : memref<8xf32, #tpu.memory_space<smem>>
    %84 = arith.extui %82 : vector<24x128xi1> to vector<24x128xi32>
    %85 = arith.sitofp %84 : vector<24x128xi32> to vector<24x128xf32>
    %86 = vector.broadcast %83 : f32 to vector<24x128xf32>
    %87 = arith.mulf %86, %85 : vector<24x128xf32>
    %88 = arith.addf %67, %87 : vector<24x128xf32>
    %89 = vector.extract_strided_slice %2 {offsets = [4, 0], sizes = [1, 128], strides = [1, 1]} : vector<32x128xi32> to vector<1x128xi32>
    %90 = vector.extract_strided_slice %2 {offsets = [12, 0], sizes = [1, 128], strides = [1, 1]} : vector<32x128xi32> to vector<1x128xi32>
    %91 = vector.extract_strided_slice %2 {offsets = [20, 0], sizes = [1, 128], strides = [1, 1]} : vector<32x128xi32> to vector<1x128xi32>
    %92 = vector.extract_strided_slice %2 {offsets = [28, 0], sizes = [1, 128], strides = [1, 1]} : vector<32x128xi32> to vector<1x128xi32>
    %93 = vector.broadcast %89 : vector<1x128xi32> to vector<24x128xi32>
    %94 = arith.cmpi eq, %93, %3 : vector<24x128xi32>
    %95 = vector.broadcast %90 : vector<1x128xi32> to vector<24x128xi32>
    %96 = arith.cmpi eq, %95, %3 : vector<24x128xi32>
    %97 = arith.ori %94, %96 : vector<24x128xi1>
    %98 = vector.broadcast %91 : vector<1x128xi32> to vector<24x128xi32>
    %99 = arith.cmpi eq, %98, %3 : vector<24x128xi32>
    %100 = arith.ori %97, %99 : vector<24x128xi1>
    %101 = vector.broadcast %92 : vector<1x128xi32> to vector<24x128xi32>
    %102 = arith.cmpi eq, %101, %3 : vector<24x128xi32>
    %103 = arith.ori %100, %102 : vector<24x128xi1>
    %c4 = arith.constant 4 : index
    %104 = memref.load %arg2[%c4] : memref<8xf32, #tpu.memory_space<smem>>
    %105 = arith.extui %103 : vector<24x128xi1> to vector<24x128xi32>
    %106 = arith.sitofp %105 : vector<24x128xi32> to vector<24x128xf32>
    %107 = vector.broadcast %104 : f32 to vector<24x128xf32>
    %108 = arith.mulf %107, %106 : vector<24x128xf32>
    %109 = arith.addf %88, %108 : vector<24x128xf32>
    %110 = vector.extract_strided_slice %2 {offsets = [5, 0], sizes = [1, 128], strides = [1, 1]} : vector<32x128xi32> to vector<1x128xi32>
    %111 = vector.extract_strided_slice %2 {offsets = [13, 0], sizes = [1, 128], strides = [1, 1]} : vector<32x128xi32> to vector<1x128xi32>
    %112 = vector.extract_strided_slice %2 {offsets = [21, 0], sizes = [1, 128], strides = [1, 1]} : vector<32x128xi32> to vector<1x128xi32>
    %113 = vector.extract_strided_slice %2 {offsets = [29, 0], sizes = [1, 128], strides = [1, 1]} : vector<32x128xi32> to vector<1x128xi32>
    %114 = vector.broadcast %110 : vector<1x128xi32> to vector<24x128xi32>
    %115 = arith.cmpi eq, %114, %3 : vector<24x128xi32>
    %116 = vector.broadcast %111 : vector<1x128xi32> to vector<24x128xi32>
    %117 = arith.cmpi eq, %116, %3 : vector<24x128xi32>
    %118 = arith.ori %115, %117 : vector<24x128xi1>
    %119 = vector.broadcast %112 : vector<1x128xi32> to vector<24x128xi32>
    %120 = arith.cmpi eq, %119, %3 : vector<24x128xi32>
    %121 = arith.ori %118, %120 : vector<24x128xi1>
    %122 = vector.broadcast %113 : vector<1x128xi32> to vector<24x128xi32>
    %123 = arith.cmpi eq, %122, %3 : vector<24x128xi32>
    %124 = arith.ori %121, %123 : vector<24x128xi1>
    %c5 = arith.constant 5 : index
    %125 = memref.load %arg2[%c5] : memref<8xf32, #tpu.memory_space<smem>>
    %126 = arith.extui %124 : vector<24x128xi1> to vector<24x128xi32>
    %127 = arith.sitofp %126 : vector<24x128xi32> to vector<24x128xf32>
    %128 = vector.broadcast %125 : f32 to vector<24x128xf32>
    %129 = arith.mulf %128, %127 : vector<24x128xf32>
    %130 = arith.addf %109, %129 : vector<24x128xf32>
    %131 = vector.extract_strided_slice %2 {offsets = [6, 0], sizes = [1, 128], strides = [1, 1]} : vector<32x128xi32> to vector<1x128xi32>
    %132 = vector.extract_strided_slice %2 {offsets = [14, 0], sizes = [1, 128], strides = [1, 1]} : vector<32x128xi32> to vector<1x128xi32>
    %133 = vector.extract_strided_slice %2 {offsets = [22, 0], sizes = [1, 128], strides = [1, 1]} : vector<32x128xi32> to vector<1x128xi32>
    %134 = vector.extract_strided_slice %2 {offsets = [30, 0], sizes = [1, 128], strides = [1, 1]} : vector<32x128xi32> to vector<1x128xi32>
    %135 = vector.broadcast %131 : vector<1x128xi32> to vector<24x128xi32>
    %136 = arith.cmpi eq, %135, %3 : vector<24x128xi32>
    %137 = vector.broadcast %132 : vector<1x128xi32> to vector<24x128xi32>
    %138 = arith.cmpi eq, %137, %3 : vector<24x128xi32>
    %139 = arith.ori %136, %138 : vector<24x128xi1>
    %140 = vector.broadcast %133 : vector<1x128xi32> to vector<24x128xi32>
    %141 = arith.cmpi eq, %140, %3 : vector<24x128xi32>
    %142 = arith.ori %139, %141 : vector<24x128xi1>
    %143 = vector.broadcast %134 : vector<1x128xi32> to vector<24x128xi32>
    %144 = arith.cmpi eq, %143, %3 : vector<24x128xi32>
    %145 = arith.ori %142, %144 : vector<24x128xi1>
    %c6 = arith.constant 6 : index
    %146 = memref.load %arg2[%c6] : memref<8xf32, #tpu.memory_space<smem>>
    %147 = arith.extui %145 : vector<24x128xi1> to vector<24x128xi32>
    %148 = arith.sitofp %147 : vector<24x128xi32> to vector<24x128xf32>
    %149 = vector.broadcast %146 : f32 to vector<24x128xf32>
    %150 = arith.mulf %149, %148 : vector<24x128xf32>
    %151 = arith.addf %130, %150 : vector<24x128xf32>
    %152 = vector.extract_strided_slice %2 {offsets = [7, 0], sizes = [1, 128], strides = [1, 1]} : vector<32x128xi32> to vector<1x128xi32>
    %153 = vector.extract_strided_slice %2 {offsets = [15, 0], sizes = [1, 128], strides = [1, 1]} : vector<32x128xi32> to vector<1x128xi32>
    %154 = vector.extract_strided_slice %2 {offsets = [23, 0], sizes = [1, 128], strides = [1, 1]} : vector<32x128xi32> to vector<1x128xi32>
    %155 = vector.extract_strided_slice %2 {offsets = [31, 0], sizes = [1, 128], strides = [1, 1]} : vector<32x128xi32> to vector<1x128xi32>
    %156 = vector.broadcast %152 : vector<1x128xi32> to vector<24x128xi32>
    %157 = arith.cmpi eq, %156, %3 : vector<24x128xi32>
    %158 = vector.broadcast %153 : vector<1x128xi32> to vector<24x128xi32>
    %159 = arith.cmpi eq, %158, %3 : vector<24x128xi32>
    %160 = arith.ori %157, %159 : vector<24x128xi1>
    %161 = vector.broadcast %154 : vector<1x128xi32> to vector<24x128xi32>
    %162 = arith.cmpi eq, %161, %3 : vector<24x128xi32>
    %163 = arith.ori %160, %162 : vector<24x128xi1>
    %164 = vector.broadcast %155 : vector<1x128xi32> to vector<24x128xi32>
    %165 = arith.cmpi eq, %164, %3 : vector<24x128xi32>
    %166 = arith.ori %163, %165 : vector<24x128xi1>
    %c7 = arith.constant 7 : index
    %167 = memref.load %arg2[%c7] : memref<8xf32, #tpu.memory_space<smem>>
    %168 = arith.extui %166 : vector<24x128xi1> to vector<24x128xi32>
    %169 = arith.sitofp %168 : vector<24x128xi32> to vector<24x128xf32>
    %170 = vector.broadcast %167 : f32 to vector<24x128xf32>
    %171 = arith.mulf %170, %169 : vector<24x128xf32>
    %172 = arith.addf %151, %171 : vector<24x128xf32>
    %c0_3 = arith.constant 0 : index
    %c0_4 = arith.constant 0 : index
    %c0_5 = arith.constant 0 : index
    %173 = vector.load %arg4[%c0_3, %c0_4, %c0_5] : memref<1x24x128xf32, #tpu.memory_space<vmem>>, vector<1x24x128xf32>
    %174 = vector.shape_cast %173 : vector<1x24x128xf32> to vector<24x128xf32>
    %c0_6 = arith.constant 0 : index
    %c0_7 = arith.constant 0 : index
    %175 = vector.load %arg5[%c0_6, %c0_7] : memref<32x24xf32, #tpu.memory_space<vmem>>, vector<32x24xf32>
    %cst_8 = arith.constant dense<0.000000e+00> : vector<32x128xf32>
    %176 = tpu.matmul %175, %172, %cst_8 {dimension_numbers = #tpu.dot_dimension_numbers<[1], [0], [0], [1], [0, 0, 1, 1], [], []>} : vector<32x24xf32>, vector<24x128xf32>, vector<32x128xf32> -> vector<32x128xf32>
    %c0_9 = arith.constant 0 : index
    %c0_10 = arith.constant 0 : index
    %177 = vector.load %arg6[%c0_9, %c0_10] : memref<32x24xf32, #tpu.memory_space<vmem>>, vector<32x24xf32>
    %cst_11 = arith.constant dense<0.000000e+00> : vector<32x128xf32>
    %178 = tpu.matmul %177, %174, %cst_11 {dimension_numbers = #tpu.dot_dimension_numbers<[1], [0], [0], [1], [0, 0, 1, 1], [], []>} : vector<32x24xf32>, vector<24x128xf32>, vector<32x128xf32> -> vector<32x128xf32>
    %179 = arith.addf %176, %178 : vector<32x128xf32>
    %cst_12 = arith.constant 0.000000e+00 : f32
    %180 = vector.broadcast %cst_12 : f32 to vector<32x128xf32>
    %181 = arith.cmpf oge, %179, %180 : vector<32x128xf32>
    %cst_13 = arith.constant 0.00999999977 : f32
    %182 = vector.broadcast %cst_13 : f32 to vector<32x128xf32>
    %183 = arith.mulf %182, %179 : vector<32x128xf32>
    %184 = arith.select %181, %179, %183 : vector<32x128xi1>, vector<32x128xf32>
    %185 = vector.extract_strided_slice %174 {offsets = [16, 0], sizes = [1, 128], strides = [1, 1]} : vector<24x128xf32> to vector<1x128xf32>
    %186 = vector.broadcast %185 : vector<1x128xf32> to vector<32x128xf32>
    %187 = arith.mulf %184, %186 : vector<32x128xf32>
    %c0_14 = arith.constant 0 : index
    %c0_15 = arith.constant 0 : index
    %c0_16 = arith.constant 0 : index
    %188 = vector.load %arg7[%c0_14, %c0_15, %c0_16] : memref<1x32x128xf32, #tpu.memory_space<vmem>>, vector<1x32x128xf32>
    %189 = vector.shape_cast %188 : vector<1x32x128xf32> to vector<32x128xf32>
    %190 = vector.shape_cast %187 : vector<32x128xf32> to vector<1x32x128xf32>
    tpu.vector_store %arg7[%c0_14, %c0_15, %c0_16], %190 {strides = array<i32>} : memref<1x32x128xf32, #tpu.memory_space<vmem>>, vector<1x32x128xf32>,
    return
  }
  func.func @transform_0(%arg0: i32, %arg1: i32) -> i32 {
    %c0_i32 = arith.constant 0 : i32
    %c0_i32_0 = arith.constant 0 : i32
    return %c0_i32 : i32
  }
  func.func @transform_1(%arg0: i32, %arg1: i32) -> (i32, i32, i32) {
    %c0_i32 = arith.constant 0 : i32
    %c0_i32_0 = arith.constant 0 : i32
    return %arg0, %c0_i32, %arg1 : i32, i32, i32
  }
  func.func @transform_2(%arg0: i32, %arg1: i32) -> (i32, i32, i32) {
    %c0_i32 = arith.constant 0 : i32
    %c0_i32_0 = arith.constant 0 : i32
    return %arg0, %c0_i32, %arg1 : i32, i32, i32
  }
  func.func @transform_3(%arg0: i32, %arg1: i32) -> (i32, i32) {
    %c0_i32 = arith.constant 0 : i32
    %c0_i32_0 = arith.constant 0 : i32
    %c0_i32_1 = arith.constant 0 : i32
    return %c0_i32, %c0_i32_0 : i32, i32
  }
  func.func @transform_4(%arg0: i32, %arg1: i32) -> (i32, i32) {
    %c0_i32 = arith.constant 0 : i32
    %c0_i32_0 = arith.constant 0 : i32
    %c0_i32_1 = arith.constant 0 : i32
    return %c0_i32, %c0_i32_0 : i32, i32
  }
  func.func @transform_5(%arg0: i32, %arg1: i32) -> (i32, i32, i32) {
    %c0_i32 = arith.constant 0 : i32
    %c0_i32_0 = arith.constant 0 : i32
    return %arg0, %c0_i32, %arg1 : i32, i32, i32
  }
}

</mosaic_0001>

<llo_original>
// kernel: tpu_custom_call.1
$region0: #{tpu_custom_call.1}
  #allocation0 [shape = 'u32[]', space=smem, size = 0x4, offset = 0x4, fixed_abs, tag = 'smem constant byte address 0x4 - core index']
  #allocation1 [shape = 'u32[144,128]{1,0:T(1,128)}', space=vmem, size = 0x12000, scoped, tag = 'internal scratch']
  %s0 = inlined_call_operand.vmem [shape: f32[8], index: 0, kind: input, shape index: {}]
  %s1 = inlined_call_operand.vmem [shape: s8[2,32,128], index: 1, kind: input, shape index: {}]
  %s2 = inlined_call_operand.vmem [shape: f32[2,24,128], index: 2, kind: input, shape index: {}]
  %s3 = inlined_call_operand.vmem [shape: f32[32,24], index: 3, kind: input, shape index: {}]
  %s4 = inlined_call_operand.vmem [shape: f32[32,24], index: 4, kind: input, shape index: {}]
  %s5 = inlined_call_operand.hbm [shape: f32[2,32,128], index: 5, kind: output, shape index: {}]
  %s6 = sld [smem:[#allocation0]]
  $region57: #{tpu_custom_call.1} parent=0
    _
  %s8 = ssub.s32 1, %s6
  %s9 = scalar_select 0, %s8, %s6
  $region1: #{tpu_custom_call.1} parent=0
    #allocation2 [shape = 'u8[512]{0}', space=smem, size = 0x200, scoped, tag = 'input window, operand 0, single buffered']
    #allocation3 [shape = 's32[2]{0}', space=sflag, size = 0x8, scoped, tag = 'scoped memory for tpu_custom_call.1']
    #allocation4 [shape = 's32[2]{0}', space=sflag, size = 0x8, scoped, tag = 'scoped memory for tpu_custom_call.1']
    #allocation5 [shape = 'u8[32768]{0}', space=vmem, size = 0x8000, scoped, tag = 'output window, operand 0']
    %10 = vsyncpa [#allocation4], 0
    %11 = vsyncpa [#allocation3], 0
    %s12 = scalar_lea.sflag [#allocation3], 1
    %13 = vsyncpa %s12, 0
    loop: start=0, step=1, limit=4
    $region2: #{tpu_custom_call.1} parent=1 // loop_pre_header
      _
    $region3: #{tpu_custom_call.1} parent=1 // loop_header
      %s15 = sphi 0, %s19
      %p16 = scmp.ge.s32.totalorder %s15, 4
      %s22 = sphi 0, %s34
      %s23 = sphi 0, %s30
      %s24 = sphi 0, %s22
      %s25 = sphi 0, %s23
      %s26 = sphi 0, %s24
      %s27 = sphi 0, %s25
      %s35 = sphi 0, %s35
      %s37 = sphi 0, %s35
      %s38 = sphi 0, %s37
      %s52 = sphi 0, %s38
      %s60 = sphi 0, %s62
      %s63 = sphi 0, %s60
      %s64 = sphi 0, %s63
      %s80 = sphi 0, %s64
      %s88 = sphi 0, %s90
      %s91 = sphi 0, %s88
      %s92 = sphi 0, %s91
      %s108 = sphi 0, %s92
      %s112 = sphi 0, %s112
      %s114 = sphi 0, %s112
      %s115 = sphi 0, %s114
      %s129 = sphi 0, %s115
      %s133 = sphi 0, %s133
      %s135 = sphi 0, %s133
      %s136 = sphi 0, %s135
      %s150 = sphi 0, %s136
      %s158 = sphi 0, %s160
      %s161 = sphi 0, %s158
      %s162 = sphi 0, %s161
      %s178 = sphi 0, %s162
    $region4: #{tpu_custom_call.1} parent=1 // loop_header_branch
      %18 = sbr.rel (%p16) target = $region8
    $region5: #{tpu_custom_call.1} parent=1 // loop_body
      %s20 = ssub.s32 %s15, 1
      %s21 = ssub.s32 %s15, 2
      %s28 = sadd.s32 1, %s23
      %p29 = scmp.ge.s32.totalorder %s28, 1
      %s30 = scalar_select %p29, 0, %s28
      %s31 = sadd.s32 1, %s22
      %s32 = scalar_select %p29, %s31, %s22
      %p33 = scmp.ge.s32.totalorder %s32, 2
      %s34 = scalar_select %p33, 0, %s32
      %s36 = sadd.s32 %s35, 1
      %p39 = scmp.eq.s32.totalorder %s15, 1
      %p40 = scmp.ne.s32.totalorder %s35, %s37
      %p41 = scmp.eq.s32.totalorder %s15, 0
      %p42 = por %p40, %p41
      %p43 = scmp.ne.s32.totalorder %s35, %s37
      %p44 = scmp.eq.s32.totalorder %s20, 1
      %p45 = por %p43, %p44
      %p46 = scmp.ne.s32.totalorder %s37, %s38
      %p47 = scmp.eq.s32.totalorder %s20, 0
      %p48 = por %p46, %p47
      %p49 = scmp.ne.s32.totalorder %s37, %s38
      %p50 = scmp.eq.s32.totalorder %s21, 1
      %p51 = por %p49, %p50
      %p53 = scmp.ne.s32.totalorder %s38, %s52
      %p54 = scmp.eq.s32.totalorder %s21, 0
      %p55 = por %p53, %p54
      %s56 = ssub.s32 %s22, %s34
      %s57 = ssub.s32 %s23, %s30
      %s58 = sor.u32 %s56, %s57
      %p59 = scmp.eq.s32.totalorder %s58, 0
      %s61 = sadd.s32 %s60, 1
      %s62 = scalar_select %p59, %s60, %s61
      %p65 = pneg %p59
      %p66 = scmp.eq.s32.totalorder %s15, 1
      %p67 = por %p65, %p66
      %p68 = scmp.ne.s32.totalorder %s60, %s63
      %p69 = scmp.eq.s32.totalorder %s15, 0
      %p70 = por %p68, %p69
      %p71 = scmp.ne.s32.totalorder %s60, %s63
      %p72 = scmp.eq.s32.totalorder %s20, 1
      %p73 = por %p71, %p72
      %p74 = scmp.ne.s32.totalorder %s63, %s64
      %p75 = scmp.eq.s32.totalorder %s20, 0
      %p76 = por %p74, %p75
      %p77 = scmp.ne.s32.totalorder %s63, %s64
      %p78 = scmp.eq.s32.totalorder %s21, 1
      %p79 = por %p77, %p78
      %p81 = scmp.ne.s32.totalorder %s64, %s80
      %p82 = scmp.eq.s32.totalorder %s21, 0
      %p83 = por %p81, %p82
      %s84 = ssub.s32 %s22, %s34
      %s85 = ssub.s32 %s23, %s30
      %s86 = sor.u32 %s84, %s85
      %p87 = scmp.eq.s32.totalorder %s86, 0
      %s89 = sadd.s32 %s88, 1
      %s90 = scalar_select %p87, %s88, %s89
      %p93 = pneg %p87
      %p94 = scmp.eq.s32.totalorder %s15, 1
      %p95 = por %p93, %p94
      %p96 = scmp.ne.s32.totalorder %s88, %s91
      %p97 = scmp.eq.s32.totalorder %s15, 0
      %p98 = por %p96, %p97
      %p99 = scmp.ne.s32.totalorder %s88, %s91
      %p100 = scmp.eq.s32.totalorder %s20, 1
      %p101 = por %p99, %p100
      %p102 = scmp.ne.s32.totalorder %s91, %s92
      %p103 = scmp.eq.s32.totalorder %s20, 0
      %p104 = por %p102, %p103
      %p105 = scmp.ne.s32.totalorder %s91, %s92
      %p106 = scmp.eq.s32.totalorder %s21, 1
      %p107 = por %p105, %p106
      %p109 = scmp.ne.s32.totalorder %s92, %s108
      %p110 = scmp.eq.s32.totalorder %s21, 0
      %p111 = por %p109, %p110
      %s113 = sadd.s32 %s112, 1
      %p116 = scmp.eq.s32.totalorder %s15, 1
      %p117 = scmp.ne.s32.totalorder %s112, %s114
      %p118 = scmp.eq.s32.totalorder %s15, 0
      %p119 = por %p117, %p118
      %p120 = scmp.ne.s32.totalorder %s112, %s114
      %p121 = scmp.eq.s32.totalorder %s20, 1
      %p122 = por %p120, %p121
      %p123 = scmp.ne.s32.totalorder %s114, %s115
      %p124 = scmp.eq.s32.totalorder %s20, 0
      %p125 = por %p123, %p124
      %p126 = scmp.ne.s32.totalorder %s114, %s115
      %p127 = scmp.eq.s32.totalorder %s21, 1
      %p128 = por %p126, %p127
      %p130 = scmp.ne.s32.totalorder %s115, %s129
      %p131 = scmp.eq.s32.totalorder %s21, 0
      %p132 = por %p130, %p131
      %s134 = sadd.s32 %s133, 1
      %p137 = scmp.eq.s32.totalorder %s15, 1
      %p138 = scmp.ne.s32.totalorder %s133, %s135
      %p139 = scmp.eq.s32.totalorder %s15, 0
      %p140 = por %p138, %p139
      %p141 = scmp.ne.s32.totalorder %s133, %s135
      %p142 = scmp.eq.s32.totalorder %s20, 1
      %p143 = por %p141, %p142
      %p144 = scmp.ne.s32.totalorder %s135, %s136
      %p145 = scmp.eq.s32.totalorder %s20, 0
      %p146 = por %p144, %p145
      %p147 = scmp.ne.s32.totalorder %s135, %s136
      %p148 = scmp.eq.s32.totalorder %s21, 1
      %p149 = por %p147, %p148
      %p151 = scmp.ne.s32.totalorder %s136, %s150
      %p152 = scmp.eq.s32.totalorder %s21, 0
      %p153 = por %p151, %p152
      %s154 = ssub.s32 %s22, %s34
      %s155 = ssub.s32 %s23, %s30
      %s156 = sor.u32 %s154, %s155
      %p157 = scmp.eq.s32.totalorder %s156, 0
      %s159 = sadd.s32 %s158, 1
      %s160 = scalar_select %p157, %s158, %s159
      %p163 = pneg %p157
      %p164 = scmp.eq.s32.totalorder %s15, 1
      %p165 = por %p163, %p164
      %p166 = scmp.ne.s32.totalorder %s158, %s161
      %p167 = scmp.eq.s32.totalorder %s15, 0
      %p168 = por %p166, %p167
      %p169 = scmp.ne.s32.totalorder %s158, %s161
      %p170 = scmp.eq.s32.totalorder %s20, 1
      %p171 = por %p169, %p170
      %p172 = scmp.ne.s32.totalorder %s161, %s162
      %p173 = scmp.eq.s32.totalorder %s20, 0
      %p174 = por %p172, %p173
      %p175 = scmp.ne.s32.totalorder %s161, %s162
      %p176 = scmp.eq.s32.totalorder %s21, 1
      %p177 = por %p175, %p176
      %p179 = scmp.ne.s32.totalorder %s162, %s178
      %p180 = scmp.eq.s32.totalorder %s21, 0
      %p181 = por %p179, %p180
      %p182 = scmp.le.s32.totalorder 1, %s15
      %p183 = scmp.lt.s32.totalorder %s15, 3
      %p184 = pnand %p182, %p183
      %p185 = pneg %p184
      // Predicated region
      $region9: #{tpu_custom_call.1} parent=5 // pred_check
        _
      $region10: #{tpu_custom_call.1} parent=5 // pred_check_branch
        %187 = sbr.rel (%p184) target = $region12
      $region11: #{tpu_custom_call.1} parent=5 // pred_region
        %s188 = ssub.s32 %s15, 1
        // Predicated region
        $region13: #{tpu_custom_call.1} parent=11 // pred_check
          %p189 = pneg %p48
        $region14: #{tpu_custom_call.1} parent=11 // pred_check_branch
          %191 = sbr.rel (%p189) target = $region16
        $region15: #{tpu_custom_call.1} parent=11 // pred_region
          %s193 = ssub.s32 16, 16
          %194 = vsyncadd [#allocation4], %s193
          %s196 = sshll.u32 %s0, 4
          %s197 = int_to_ptr.vmem [resolvable:$true] %s196
          %199 = dma.vmem_to_smem %s197, 16, [#allocation2], [#allocation4]
        $region16: #{tpu_custom_call.1} parent=11 // pred_fallthru
          _
        // Predicated region
        $region17: #{tpu_custom_call.1} parent=11 // pred_check
          %p200 = pneg %p125
        $region18: #{tpu_custom_call.1} parent=11 // pred_check_branch
          %202 = sbr.rel (%p200) target = $region20
        $region19: #{tpu_custom_call.1} parent=11 // pred_region
          _
        $region20: #{tpu_custom_call.1} parent=11 // pred_fallthru
          _
        // Predicated region
        $region21: #{tpu_custom_call.1} parent=11 // pred_check
          %p203 = pneg %p146
        $region22: #{tpu_custom_call.1} parent=11 // pred_check_branch
          %205 = sbr.rel (%p203) target = $region24
        $region23: #{tpu_custom_call.1} parent=11 // pred_region
          _
        $region24: #{tpu_custom_call.1} parent=11 // pred_fallthru
          _
      $region12: #{tpu_custom_call.1} parent=5 // pred_fallthru
        _
      %p206 = scmp.lt.s32.totalorder %s15, 2
      // Predicated region
      $region25: #{tpu_custom_call.1} parent=5 // pred_check
        %p207 = pneg %p206
      $region26: #{tpu_custom_call.1} parent=5 // pred_check_branch
        %209 = sbr.rel (%p207) target = $region28
      $region27: #{tpu_custom_call.1} parent=5 // pred_region
        // Predicated region
        $region29: #{tpu_custom_call.1} parent=27 // pred_check
          %p210 = pneg %p70
        $region30: #{tpu_custom_call.1} parent=27 // pred_check_branch
          %212 = sbr.rel (%p210) target = $region32
        $region31: #{tpu_custom_call.1} parent=27 // pred_region
          %p213 = scmp.lt.s32.totalorder %s22, 1
          %s214 = scalar_select %p213, %s22, 1
          %p215 = scmp.lt.s32.totalorder %s23, 0
          %s216 = scalar_select %p215, %s23, 0
          %s217 = sadd.s32 %s216, %s214
          %s218 = smul.addr %s217, 8
          %s219 = scalar_lea.vmem %s1, %s218
        $region32: #{tpu_custom_call.1} parent=27 // pred_fallthru
          _
        // Predicated region
        $region33: #{tpu_custom_call.1} parent=27 // pred_check
          %p220 = pneg %p98
        $region34: #{tpu_custom_call.1} parent=27 // pred_check_branch
          %222 = sbr.rel (%p220) target = $region36
        $region35: #{tpu_custom_call.1} parent=27 // pred_region
          %p223 = scmp.lt.s32.totalorder %s22, 1
          %s224 = scalar_select %p223, %s22, 1
          %p225 = scmp.lt.s32.totalorder %s23, 0
          %s226 = scalar_select %p225, %s23, 0
          %s227 = smul.addr %s224, 3
          %s228 = sadd.s32 %s226, %s227
          %s229 = smul.addr %s228, 8
          %s230 = scalar_lea.vmem %s2, %s229
        $region36: #{tpu_custom_call.1} parent=27 // pred_fallthru
          _
      $region28: #{tpu_custom_call.1} parent=5 // pred_fallthru
        _
      %p231 = scmp.le.s32.totalorder 1, %s15
      %p232 = scmp.lt.s32.totalorder %s15, 3
      %p233 = pnand %p231, %p232
      %p234 = pneg %p233
      // Predicated region
      $region37: #{tpu_custom_call.1} parent=5 // pred_check
        _
      $region38: #{tpu_custom_call.1} parent=5 // pred_check_branch
        %236 = sbr.rel (%p233) target = $region40
      $region39: #{tpu_custom_call.1} parent=5 // pred_region
        %s237 = ssub.s32 %s15, 1
        // Predicated region
        $region41: #{tpu_custom_call.1} parent=39 // pred_check
          %p238 = pneg %p48
        $region42: #{tpu_custom_call.1} parent=39 // pred_check_branch
          %240 = sbr.rel (%p238) target = $region44
        $region43: #{tpu_custom_call.1} parent=39 // pred_region
          %241 = dma.done [#allocation4], 16
        $region44: #{tpu_custom_call.1} parent=39 // pred_fallthru
          _
        %242 = sfence
        %p243 = pneg %p48
        %p244 = pneg %p45
        %p245 = scmp.lt.s32.totalorder %s24, 1
        %s246 = scalar_select %p245, %s24, 1
        %p247 = scmp.lt.s32.totalorder %s25, 0
        %s248 = scalar_select %p247, %s25, 0
        %s249 = sadd.s32 %s248, %s246
        %s250 = smul.addr %s249, 8
        %s251 = scalar_lea.vmem %s1, %s250
        %p252 = pneg %p76
        %p253 = pneg %p73
        %p254 = scmp.lt.s32.totalorder %s24, 1
        %s255 = scalar_select %p254, %s24, 1
        %p256 = scmp.lt.s32.totalorder %s25, 0
        %s257 = scalar_select %p256, %s25, 0
        %s258 = smul.addr %s255, 3
        %s259 = sadd.s32 %s257, %s258
        %s260 = smul.addr %s259, 8
        %s261 = scalar_lea.vmem %s2, %s260
        %p262 = pneg %p104
        %p263 = pneg %p101
        %p264 = pneg %p125
        %p265 = pneg %p122
        %p266 = pneg %p146
        %p267 = pneg %p143
        %p268 = pneg %p174
        %p269 = pneg %p171
        %s270 = sand.u32 %s161, 1
        %s271 = scalar_lea.sflag [#allocation3], %s270
        %s272 = sand.u32 %s161, 1
        %s273 = smul.addr %s272, 32
        %s274 = scalar_lea.vmem [#allocation5], %s273
        %p275 = scmp.lt.s32.totalorder %s24, 1
        %s276 = scalar_select %p275, %s24, 1
        %p277 = scmp.lt.s32.totalorder %s25, 0
        %s278 = scalar_select %p277, %s25, 0
        %s279 = sadd.s32 %s278, %s276
        %s280 = smul.addr %s279, 8
        %s281 = scalar_lea.vmem %s1, %s280
        %p282 = scmp.lt.s32.totalorder %s24, 1
        %s283 = scalar_select %p282, %s24, 1
        %p284 = scmp.lt.s32.totalorder %s25, 0
        %s285 = scalar_select %p284, %s25, 0
        %s286 = smul.addr %s283, 3
        %s287 = sadd.s32 %s285, %s286
        %s288 = smul.addr %s287, 8
        %s289 = scalar_lea.vmem %s2, %s288
        %v290 = vld [vmem:[%s281] sm:$0xff]
        %v291 = vunpack.c.0.s8 %v290
        %v292 = vunpack.c.1.s8 %v290
        %v293 = vunpack.c.2.s8 %v290
        %v294 = vunpack.c.3.s8 %v290
        %v295 = vlaneseq
        %v296 = vshrl.u32 %v295, 7
        %v297 = vadd.s32 %v296, 8
        %v298 = vadd.s32 %v296, 16
        %v299 = vlaneseq
        %v300 = vshrl.u32 %v299, 7
        %v301 = vsub.s32 0, %v300
        %v302 = vrot.slane %v291, %v301
        %vm303 = vcmp.eq.s32.totalorder %v302, %v296
        %vm304 = vcmp.eq.s32.totalorder %v302, %v297
        %vm305 = vcmp.eq.s32.totalorder %v302, %v298
        %v306 = vlaneseq
        %v307 = vshrl.u32 %v306, 7
        %v308 = vsub.s32 0, %v307
        %v309 = vrot.slane %v292, %v308
        %vm310 = vcmp.eq.s32.totalorder %v309, %v296
        %vm311 = vcmp.eq.s32.totalorder %v309, %v297
        %vm312 = vcmp.eq.s32.totalorder %v309, %v298
        %vm313 = vmor %vm303, %vm310
        %vm314 = vmor %vm304, %vm311
        %vm315 = vmor %vm305, %vm312
        %v316 = vlaneseq
        %v317 = vshrl.u32 %v316, 7
        %v318 = vsub.s32 0, %v317
        %v319 = vrot.slane %v293, %v318
        %vm320 = vcmp.eq.s32.totalorder %v319, %v296
        %vm321 = vcmp.eq.s32.totalorder %v319, %v297
        %vm322 = vcmp.eq.s32.totalorder %v319, %v298
        %vm323 = vmor %vm313, %vm320
        %vm324 = vmor %vm314, %vm321
        %vm325 = vmor %vm315, %vm322
        %v326 = vlaneseq
        %v327 = vshrl.u32 %v326, 7
        %v328 = vsub.s32 0, %v327
        %v329 = vrot.slane %v294, %v328
        %vm330 = vcmp.eq.s32.totalorder %v329, %v296
        %vm331 = vcmp.eq.s32.totalorder %v329, %v297
        %vm332 = vcmp.eq.s32.totalorder %v329, %v298
        %vm333 = vmor %vm323, %vm330
        %vm334 = vmor %vm324, %vm331
        %vm335 = vmor %vm325, %vm332
        %s336 = sld [smem:[#allocation2]]
        %v337 = vsel %vm333, 1, 0
        %v338 = vsel %vm334, 1, 0
        %v339 = vsel %vm335, 1, 0
        %v340 = vcvt.s32.f32 %v337
        %v341 = vcvt.s32.f32 %v338
        %v342 = vcvt.s32.f32 %v339
        %v343 = vstv %s336
        %v344 = vmul.f32 %v343, %v340
        %v345 = vmul.f32 %v343, %v341
        %v346 = vmul.f32 %v343, %v342
        %v347 = vadd.f32 %v344, 0.0
        %v348 = vadd.f32 %v345, 0.0
        %v349 = vadd.f32 %v346, 0.0
        %v350 = vlaneseq
        %v351 = vshrl.u32 %v350, 7
        %v352 = vsub.s32 1, %v351
        %v353 = vrot.slane %v291, %v352
        %vm354 = vcmp.eq.s32.totalorder %v353, %v296
        %vm355 = vcmp.eq.s32.totalorder %v353, %v297
        %vm356 = vcmp.eq.s32.totalorder %v353, %v298
        %v357 = vlaneseq
        %v358 = vshrl.u32 %v357, 7
        %v359 = vsub.s32 1, %v358
        %v360 = vrot.slane %v292, %v359
        %vm361 = vcmp.eq.s32.totalorder %v360, %v296
        %vm362 = vcmp.eq.s32.totalorder %v360, %v297
        %vm363 = vcmp.eq.s32.totalorder %v360, %v298
        %vm364 = vmor %vm354, %vm361
        %vm365 = vmor %vm355, %vm362
        %vm366 = vmor %vm356, %vm363
        %v367 = vlaneseq
        %v368 = vshrl.u32 %v367, 7
        %v369 = vsub.s32 1, %v368
        %v370 = vrot.slane %v293, %v369
        %vm371 = vcmp.eq.s32.totalorder %v370, %v296
        %vm372 = vcmp.eq.s32.totalorder %v370, %v297
        %vm373 = vcmp.eq.s32.totalorder %v370, %v298
        %vm374 = vmor %vm364, %vm371
        %vm375 = vmor %vm365, %vm372
        %vm376 = vmor %vm366, %vm373
        %v377 = vlaneseq
        %v378 = vshrl.u32 %v377, 7
        %v379 = vsub.s32 1, %v378
        %v380 = vrot.slane %v294, %v379
        %vm381 = vcmp.eq.s32.totalorder %v380, %v296
        %vm382 = vcmp.eq.s32.totalorder %v380, %v297
        %vm383 = vcmp.eq.s32.totalorder %v380, %v298
        %vm384 = vmor %vm374, %vm381
        %vm385 = vmor %vm375, %vm382
        %vm386 = vmor %vm376, %vm383
        %s387 = sld [smem:[#allocation2 + $0x1]]
        %v388 = vsel %vm384, 1, 0
        %v389 = vsel %vm385, 1, 0
        %v390 = vsel %vm386, 1, 0
        %v391 = vcvt.s32.f32 %v388
        %v392 = vcvt.s32.f32 %v389
        %v393 = vcvt.s32.f32 %v390
        %v394 = vstv %s387
        %v395 = vmul.f32 %v394, %v391
        %v396 = vmul.f32 %v394, %v392
        %v397 = vmul.f32 %v394, %v393
        %v398 = vadd.f32 %v347, %v395
        %v399 = vadd.f32 %v348, %v396
        %v400 = vadd.f32 %v349, %v397
        %v401 = vlaneseq
        %v402 = vshrl.u32 %v401, 7
        %v403 = vsub.s32 2, %v402
        %v404 = vrot.slane %v291, %v403
        %vm405 = vcmp.eq.s32.totalorder %v404, %v296
        %vm406 = vcmp.eq.s32.totalorder %v404, %v297
        %vm407 = vcmp.eq.s32.totalorder %v404, %v298
        %v408 = vlaneseq
        %v409 = vshrl.u32 %v408, 7
        %v410 = vsub.s32 2, %v409
        %v411 = vrot.slane %v292, %v410
        %vm412 = vcmp.eq.s32.totalorder %v411, %v296
        %vm413 = vcmp.eq.s32.totalorder %v411, %v297
        %vm414 = vcmp.eq.s32.totalorder %v411, %v298
        %vm415 = vmor %vm405, %vm412
        %vm416 = vmor %vm406, %vm413
        %vm417 = vmor %vm407, %vm414
        %v418 = vlaneseq
        %v419 = vshrl.u32 %v418, 7
        %v420 = vsub.s32 2, %v419
        %v421 = vrot.slane %v293, %v420
        %vm422 = vcmp.eq.s32.totalorder %v421, %v296
        %vm423 = vcmp.eq.s32.totalorder %v421, %v297
        %vm424 = vcmp.eq.s32.totalorder %v421, %v298
        %vm425 = vmor %vm415, %vm422
        %vm426 = vmor %vm416, %vm423
        %vm427 = vmor %vm417, %vm424
        %v428 = vlaneseq
        %v429 = vshrl.u32 %v428, 7
        %v430 = vsub.s32 2, %v429
        %v431 = vrot.slane %v294, %v430
        %vm432 = vcmp.eq.s32.totalorder %v431, %v296
        %vm433 = vcmp.eq.s32.totalorder %v431, %v297
        %vm434 = vcmp.eq.s32.totalorder %v431, %v298
        %vm435 = vmor %vm425, %vm432
        %vm436 = vmor %vm426, %vm433
        %vm437 = vmor %vm427, %vm434
        %s438 = sld [smem:[#allocation2 + $0x2]]
        %v439 = vsel %vm435, 1, 0
        %v440 = vsel %vm436, 1, 0
        %v441 = vsel %vm437, 1, 0
        %v442 = vcvt.s32.f32 %v439
        %v443 = vcvt.s32.f32 %v440
        %v444 = vcvt.s32.f32 %v441
        %v445 = vstv %s438
        %v446 = vmul.f32 %v445, %v442
        %v447 = vmul.f32 %v445, %v443
        %v448 = vmul.f32 %v445, %v444
        %v449 = vadd.f32 %v398, %v446
        %v450 = vadd.f32 %v399, %v447
        %v451 = vadd.f32 %v400, %v448
        %v452 = vlaneseq
        %v453 = vshrl.u32 %v452, 7
        %v454 = vsub.s32 3, %v453
        %v455 = vrot.slane %v291, %v454
        %vm456 = vcmp.eq.s32.totalorder %v455, %v296
        %vm457 = vcmp.eq.s32.totalorder %v455, %v297
        %vm458 = vcmp.eq.s32.totalorder %v455, %v298
        %v459 = vlaneseq
        %v460 = vshrl.u32 %v459, 7
        %v461 = vsub.s32 3, %v460
        %v462 = vrot.slane %v292, %v461
        %vm463 = vcmp.eq.s32.totalorder %v462, %v296
        %vm464 = vcmp.eq.s32.totalorder %v462, %v297
        %vm465 = vcmp.eq.s32.totalorder %v462, %v298
        %vm466 = vmor %vm456, %vm463
        %vm467 = vmor %vm457, %vm464
        %vm468 = vmor %vm458, %vm465
        %v469 = vlaneseq
        %v470 = vshrl.u32 %v469, 7
        %v471 = vsub.s32 3, %v470
        %v472 = vrot.slane %v293, %v471
        %vm473 = vcmp.eq.s32.totalorder %v472, %v296
        %vm474 = vcmp.eq.s32.totalorder %v472, %v297
        %vm475 = vcmp.eq.s32.totalorder %v472, %v298
        %vm476 = vmor %vm466, %vm473
        %vm477 = vmor %vm467, %vm474
        %vm478 = vmor %vm468, %vm475
        %v479 = vlaneseq
        %v480 = vshrl.u32 %v479, 7
        %v481 = vsub.s32 3, %v480
        %v482 = vrot.slane %v294, %v481
        %vm483 = vcmp.eq.s32.totalorder %v482, %v296
        %vm484 = vcmp.eq.s32.totalorder %v482, %v297
        %vm485 = vcmp.eq.s32.totalorder %v482, %v298
        %vm486 = vmor %vm476, %vm483
        %vm487 = vmor %vm477, %vm484
        %vm488 = vmor %vm478, %vm485
        %s489 = sld [smem:[#allocation2 + $0x3]]
        %v490 = vsel %vm486, 1, 0
        %v491 = vsel %vm487, 1, 0
        %v492 = vsel %vm488, 1, 0
        %v493 = vcvt.s32.f32 %v490
        %v494 = vcvt.s32.f32 %v491
        %v495 = vcvt.s32.f32 %v492
        %v496 = vstv %s489
        %v497 = vmul.f32 %v496, %v493
        %v498 = vmul.f32 %v496, %v494
        %v499 = vmul.f32 %v496, %v495
        %v500 = vadd.f32 %v449, %v497
        %v501 = vadd.f32 %v450, %v498
        %v502 = vadd.f32 %v451, %v499
        %v503 = vlaneseq
        %v504 = vshrl.u32 %v503, 7
        %v505 = vsub.s32 4, %v504
        %v506 = vrot.slane %v291, %v505
        %vm507 = vcmp.eq.s32.totalorder %v506, %v296
        %vm508 = vcmp.eq.s32.totalorder %v506, %v297
        %vm509 = vcmp.eq.s32.totalorder %v506, %v298
        %v510 = vlaneseq
        %v511 = vshrl.u32 %v510, 7
        %v512 = vsub.s32 4, %v511
        %v513 = vrot.slane %v292, %v512
        %vm514 = vcmp.eq.s32.totalorder %v513, %v296
        %vm515 = vcmp.eq.s32.totalorder %v513, %v297
        %vm516 = vcmp.eq.s32.totalorder %v513, %v298
        %vm517 = vmor %vm507, %vm514
        %vm518 = vmor %vm508, %vm515
        %vm519 = vmor %vm509, %vm516
        %v520 = vlaneseq
        %v521 = vshrl.u32 %v520, 7
        %v522 = vsub.s32 4, %v521
        %v523 = vrot.slane %v293, %v522
        %vm524 = vcmp.eq.s32.totalorder %v523, %v296
        %vm525 = vcmp.eq.s32.totalorder %v523, %v297
        %vm526 = vcmp.eq.s32.totalorder %v523, %v298
        %vm527 = vmor %vm517, %vm524
        %vm528 = vmor %vm518, %vm525
        %vm529 = vmor %vm519, %vm526
        %v530 = vlaneseq
        %v531 = vshrl.u32 %v530, 7
        %v532 = vsub.s32 4, %v531
        %v533 = vrot.slane %v294, %v532
        %vm534 = vcmp.eq.s32.totalorder %v533, %v296
        %vm535 = vcmp.eq.s32.totalorder %v533, %v297
        %vm536 = vcmp.eq.s32.totalorder %v533, %v298
        %vm537 = vmor %vm527, %vm534
        %vm538 = vmor %vm528, %vm535
        %vm539 = vmor %vm529, %vm536
        %s540 = sld [smem:[#allocation2 + $0x4]]
        %v541 = vsel %vm537, 1, 0
        %v542 = vsel %vm538, 1, 0
        %v543 = vsel %vm539, 1, 0
        %v544 = vcvt.s32.f32 %v541
        %v545 = vcvt.s32.f32 %v542
        %v546 = vcvt.s32.f32 %v543
        %v547 = vstv %s540
        %v548 = vmul.f32 %v547, %v544
        %v549 = vmul.f32 %v547, %v545
        %v550 = vmul.f32 %v547, %v546
        %v551 = vadd.f32 %v500, %v548
        %v552 = vadd.f32 %v501, %v549
        %v553 = vadd.f32 %v502, %v550
        %v554 = vlaneseq
        %v555 = vshrl.u32 %v554, 7
        %v556 = vsub.s32 5, %v555
        %v557 = vrot.slane %v291, %v556
        %vm558 = vcmp.eq.s32.totalorder %v557, %v296
        %vm559 = vcmp.eq.s32.totalorder %v557, %v297
        %vm560 = vcmp.eq.s32.totalorder %v557, %v298
        %v561 = vlaneseq
        %v562 = vshrl.u32 %v561, 7
        %v563 = vsub.s32 5, %v562
        %v564 = vrot.slane %v292, %v563
        %vm565 = vcmp.eq.s32.totalorder %v564, %v296
        %vm566 = vcmp.eq.s32.totalorder %v564, %v297
        %vm567 = vcmp.eq.s32.totalorder %v564, %v298
        %vm568 = vmor %vm558, %vm565
        %vm569 = vmor %vm559, %vm566
        %vm570 = vmor %vm560, %vm567
        %v571 = vlaneseq
        %v572 = vshrl.u32 %v571, 7
        %v573 = vsub.s32 5, %v572
        %v574 = vrot.slane %v293, %v573
        %vm575 = vcmp.eq.s32.totalorder %v574, %v296
        %vm576 = vcmp.eq.s32.totalorder %v574, %v297
        %vm577 = vcmp.eq.s32.totalorder %v574, %v298
        %vm578 = vmor %vm568, %vm575
        %vm579 = vmor %vm569, %vm576
        %vm580 = vmor %vm570, %vm577
        %v581 = vlaneseq
        %v582 = vshrl.u32 %v581, 7
        %v583 = vsub.s32 5, %v582
        %v584 = vrot.slane %v294, %v583
        %vm585 = vcmp.eq.s32.totalorder %v584, %v296
        %vm586 = vcmp.eq.s32.totalorder %v584, %v297
        %vm587 = vcmp.eq.s32.totalorder %v584, %v298
        %vm588 = vmor %vm578, %vm585
        %vm589 = vmor %vm579, %vm586
        %vm590 = vmor %vm580, %vm587
        %s591 = sld [smem:[#allocation2 + $0x5]]
        %v592 = vsel %vm588, 1, 0
        %v593 = vsel %vm589, 1, 0
        %v594 = vsel %vm590, 1, 0
        %v595 = vcvt.s32.f32 %v592
        %v596 = vcvt.s32.f32 %v593
        %v597 = vcvt.s32.f32 %v594
        %v598 = vstv %s591
        %v599 = vmul.f32 %v598, %v595
        %v600 = vmul.f32 %v598, %v596
        %v601 = vmul.f32 %v598, %v597
        %v602 = vadd.f32 %v551, %v599
        %v603 = vadd.f32 %v552, %v600
        %v604 = vadd.f32 %v553, %v601
        %v605 = vlaneseq
        %v606 = vshrl.u32 %v605, 7
        %v607 = vsub.s32 6, %v606
        %v608 = vrot.slane %v291, %v607
        %vm609 = vcmp.eq.s32.totalorder %v608, %v296
        %vm610 = vcmp.eq.s32.totalorder %v608, %v297
        %vm611 = vcmp.eq.s32.totalorder %v608, %v298
        %v612 = vlaneseq
        %v613 = vshrl.u32 %v612, 7
        %v614 = vsub.s32 6, %v613
        %v615 = vrot.slane %v292, %v614
        %vm616 = vcmp.eq.s32.totalorder %v615, %v296
        %vm617 = vcmp.eq.s32.totalorder %v615, %v297
        %vm618 = vcmp.eq.s32.totalorder %v615, %v298
        %vm619 = vmor %vm609, %vm616
        %vm620 = vmor %vm610, %vm617
        %vm621 = vmor %vm611, %vm618
        %v622 = vlaneseq
        %v623 = vshrl.u32 %v622, 7
        %v624 = vsub.s32 6, %v623
        %v625 = vrot.slane %v293, %v624
        %vm626 = vcmp.eq.s32.totalorder %v625, %v296
        %vm627 = vcmp.eq.s32.totalorder %v625, %v297
        %vm628 = vcmp.eq.s32.totalorder %v625, %v298
        %vm629 = vmor %vm619, %vm626
        %vm630 = vmor %vm620, %vm627
        %vm631 = vmor %vm621, %vm628
        %v632 = vlaneseq
        %v633 = vshrl.u32 %v632, 7
        %v634 = vsub.s32 6, %v633
        %v635 = vrot.slane %v294, %v634
        %vm636 = vcmp.eq.s32.totalorder %v635, %v296
        %vm637 = vcmp.eq.s32.totalorder %v635, %v297
        %vm638 = vcmp.eq.s32.totalorder %v635, %v298
        %vm639 = vmor %vm629, %vm636
        %vm640 = vmor %vm630, %vm637
        %vm641 = vmor %vm631, %vm638
        %s642 = sld [smem:[#allocation2 + $0x6]]
        %v643 = vsel %vm639, 1, 0
        %v644 = vsel %vm640, 1, 0
        %v645 = vsel %vm641, 1, 0
        %v646 = vcvt.s32.f32 %v643
        %v647 = vcvt.s32.f32 %v644
        %v648 = vcvt.s32.f32 %v645
        %v649 = vstv %s642
        %v650 = vmul.f32 %v649, %v646
        %v651 = vmul.f32 %v649, %v647
        %v652 = vmul.f32 %v649, %v648
        %v653 = vadd.f32 %v602, %v650
        %v654 = vadd.f32 %v603, %v651
        %v655 = vadd.f32 %v604, %v652
        %v656 = vlaneseq
        %v657 = vshrl.u32 %v656, 7
        %v658 = vsub.s32 7, %v657
        %v659 = vrot.slane %v291, %v658
        %vm660 = vcmp.eq.s32.totalorder %v659, %v296
        %vm661 = vcmp.eq.s32.totalorder %v659, %v297
        %vm662 = vcmp.eq.s32.totalorder %v659, %v298
        %v663 = vlaneseq
        %v664 = vshrl.u32 %v663, 7
        %v665 = vsub.s32 7, %v664
        %v666 = vrot.slane %v292, %v665
        %vm667 = vcmp.eq.s32.totalorder %v666, %v296
        %vm668 = vcmp.eq.s32.totalorder %v666, %v297
        %vm669 = vcmp.eq.s32.totalorder %v666, %v298
        %vm670 = vmor %vm660, %vm667
        %vm671 = vmor %vm661, %vm668
        %vm672 = vmor %vm662, %vm669
        %v673 = vlaneseq
        %v674 = vshrl.u32 %v673, 7
        %v675 = vsub.s32 7, %v674
        %v676 = vrot.slane %v293, %v675
        %vm677 = vcmp.eq.s32.totalorder %v676, %v296
        %vm678 = vcmp.eq.s32.totalorder %v676, %v297
        %vm679 = vcmp.eq.s32.totalorder %v676, %v298
        %vm680 = vmor %vm670, %vm677
        %vm681 = vmor %vm671, %vm678
        %vm682 = vmor %vm672, %vm679
        %v683 = vlaneseq
        %v684 = vshrl.u32 %v683, 7
        %v685 = vsub.s32 7, %v684
        %v686 = vrot.slane %v294, %v685
        %vm687 = vcmp.eq.s32.totalorder %v686, %v296
        %vm688 = vcmp.eq.s32.totalorder %v686, %v297
        %vm689 = vcmp.eq.s32.totalorder %v686, %v298
        %vm690 = vmor %vm680, %vm687
        %vm691 = vmor %vm681, %vm688
        %vm692 = vmor %vm682, %vm689
        %s693 = sld [smem:[#allocation2 + $0x7]]
        %v694 = vsel %vm690, 1, 0
        %v695 = vsel %vm691, 1, 0
        %v696 = vsel %vm692, 1, 0
        %v697 = vcvt.s32.f32 %v694
        %v698 = vcvt.s32.f32 %v695
        %v699 = vcvt.s32.f32 %v696
        %v700 = vstv %s693
        %v701 = vmul.f32 %v700, %v697
        %v702 = vmul.f32 %v700, %v698
        %v703 = vmul.f32 %v700, %v699
        %v704 = vadd.f32 %v653, %v701
        %v705 = vadd.f32 %v654, %v702
        %v706 = vadd.f32 %v655, %v703
        %v707 = vld [vmem:[%s289] sm:$0xff]
        %v708 = vld [vmem:[%s289 + $0x8] sm:$0xff]
        %v709 = vld [vmem:[%s289 + $0x10] sm:$0xff]
        %v710 = vld [vmem:[%s3] sm:$0xff]
        %v711 = vld [vmem:[%s3 + $0x8] sm:$0xff]
        %v712 = vld [vmem:[%s3 + $0x10] sm:$0xff]
        %v713 = vld [vmem:[%s3 + $0x18] sm:$0xff]
        %v714 = vld [vmem:[%s4] sm:$0xff]
        %v715 = vld [vmem:[%s4 + $0x8] sm:$0xff]
        %v716 = vld [vmem:[%s4 + $0x10] sm:$0xff]
        %v717 = vld [vmem:[%s4 + $0x18] sm:$0xff]
        %vm718 = vcmask 195584
        %v720 = vsel %vm718, %v714, 0
        %v723 = vsel %vm718, %v715, 0
        %v726 = vsel %vm718, %v716, 0
        %v729 = vsel %vm718, %v717, 0
        %731 = vmatprep.subr.mxu0 0.0
        %732 = vmatpush1.msra.mxu0 0.0
        %733 = vmatprep.subr.mxu0 0.0
        %734 = vmatpush1.msra.mxu0 0.0
        %735 = vmatprep.subr.mxu0 0.0
        %736 = vmatpush1.msra.mxu0 0.0
        %737 = vmatprep.subr.mxu0 0.0
        %738 = vmatpush1.msra.mxu0 0.0
        %739 = vmatprep.subr.mxu0 0.0
        %740 = vmatpush1.msra.mxu0 0.0
        %741 = vmatprep.subr.mxu0 0.0
        %742 = vmatpush1.msra.mxu0 0.0
        %743 = vmatprep.subr.mxu0 0.0
        %744 = vmatpush1.msra.mxu0 0.0
        %745 = vmatprep.subr.mxu0 0.0
        %746 = vmatpush1.msra.mxu0 0.0
        %747 = vmatprep.subr.mxu0 0.0
        %748 = vmatpush1.msra.mxu0 0.0
        %749 = vmatprep.subr.mxu0 0.0
        %750 = vmatpush1.msra.mxu0 0.0
        %751 = vmatprep.subr.mxu0 0.0
        %752 = vmatpush1.msra.mxu0 0.0
        %753 = vmatprep.subr.mxu0 0.0
        %754 = vmatpush1.msra.mxu0 0.0
        %755 = vmatprep.subr.mxu0 0.0
        %756 = vmatpush1.msra.mxu0 0.0
        %757 = vmatprep.subr.mxu0 0.0
        %758 = vmatpush1.msra.mxu0 %v709
        %759 = vmatprep.subr.mxu0 0.0
        %760 = vmatpush1.msra.mxu0 %v708
        %761 = vmatprep.subr.mxu0 0.0
        %762 = vmatpush1.msra.mxu0 %v707
        %763 = vmatprep.subr.mxu0 0.0
        %764 = vmatpush2.msra.mxu0 0.0
        %765 = vmatprep.subr.mxu0 0.0
        %766 = vmatpush2.msra.mxu0 0.0
        %767 = vmatprep.subr.mxu0 0.0
        %768 = vmatpush2.msra.mxu0 0.0
        %769 = vmatprep.subr.mxu0 0.0
        %770 = vmatpush2.msra.mxu0 0.0
        %771 = vmatprep.subr.mxu0 0.0
        %772 = vmatpush2.msra.mxu0 0.0
        %773 = vmatprep.subr.mxu0 0.0
        %774 = vmatpush2.msra.mxu0 0.0
        %775 = vmatprep.subr.mxu0 0.0
        %776 = vmatpush2.msra.mxu0 0.0
        %777 = vmatprep.subr.mxu0 0.0
        %778 = vmatpush2.msra.mxu0 0.0
        %779 = vmatprep.subr.mxu0 0.0
        %780 = vmatpush2.msra.mxu0 0.0
        %781 = vmatprep.subr.mxu0 0.0
        %782 = vmatpush2.msra.mxu0 0.0
        %783 = vmatprep.subr.mxu0 0.0
        %784 = vmatpush2.msra.mxu0 0.0
        %785 = vmatprep.subr.mxu0 0.0
        %786 = vmatpush2.msra.mxu0 0.0
        %787 = vmatprep.subr.mxu0 0.0
        %788 = vmatpush2.msra.mxu0 0.0
        %789 = vmatprep.subr.mxu0 0.0
        %790 = vmatpush2.msra.mxu0 0.0
        %791 = vmatprep.subr.mxu0 0.0
        %792 = vmatpush2.msra.mxu0 0.0
        %793 = vmatprep.subr.mxu0 0.0
        %794 = vmatpush2.msra.mxu0 0.0
        %795 = vmatprep.mubr.f32.mxu0 0.0
        %796 = vmatmul.mubr.f32.gmra.mxu0 %v720
        %v797 = vpop.f32.mrf.mxu0
        %v798 = vadd.f32 0.0, %v797
        %v799 = vpop.f32.mrf.mxu0
        %800 = vmatprep.mubr.f32.mxu0 0.0
        %801 = vmatmul.mubr.f32.gmra.mxu0 %v723
        %v802 = vpop.f32.mrf.mxu0
        %v803 = vadd.f32 0.0, %v802
        %v804 = vpop.f32.mrf.mxu0
        %805 = vmatprep.mubr.f32.mxu0 0.0
        %806 = vmatmul.mubr.f32.gmra.mxu0 %v726
        %v807 = vpop.f32.mrf.mxu0
        %v808 = vadd.f32 0.0, %v807
        %v809 = vpop.f32.mrf.mxu0
        %810 = vmatprep.mubr.f32.mxu0 0.0
        %811 = vmatmul.mubr.f32.gmra.mxu0 %v729
        %v812 = vpop.f32.mrf.mxu0
        %v813 = vadd.f32 0.0, %v812
        %v814 = vpop.f32.mrf.mxu0
        %815 = vdwg.mxu0
        %v817 = vsel %vm718, %v710, 0
        %v820 = vsel %vm718, %v711, 0
        %v823 = vsel %vm718, %v712, 0
        %v826 = vsel %vm718, %v713, 0
        %828 = vmatprep.subr.mxu0 0.0
        %829 = vmatpush1.msra.mxu0 0.0
        %830 = vmatprep.subr.mxu0 0.0
        %831 = vmatpush1.msra.mxu0 0.0
        %832 = vmatprep.subr.mxu0 0.0
        %833 = vmatpush1.msra.mxu0 0.0
        %834 = vmatprep.subr.mxu0 0.0
        %835 = vmatpush1.msra.mxu0 0.0
        %836 = vmatprep.subr.mxu0 0.0
        %837 = vmatpush1.msra.mxu0 0.0
        %838 = vmatprep.subr.mxu0 0.0
        %839 = vmatpush1.msra.mxu0 0.0
        %840 = vmatprep.subr.mxu0 0.0
        %841 = vmatpush1.msra.mxu0 0.0
        %842 = vmatprep.subr.mxu0 0.0
        %843 = vmatpush1.msra.mxu0 0.0
        %844 = vmatprep.subr.mxu0 0.0
        %845 = vmatpush1.msra.mxu0 0.0
        %846 = vmatprep.subr.mxu0 0.0
        %847 = vmatpush1.msra.mxu0 0.0
        %848 = vmatprep.subr.mxu0 0.0
        %849 = vmatpush1.msra.mxu0 0.0
        %850 = vmatprep.subr.mxu0 0.0
        %851 = vmatpush1.msra.mxu0 0.0
        %852 = vmatprep.subr.mxu0 0.0
        %853 = vmatpush1.msra.mxu0 0.0
        %854 = vmatprep.subr.mxu0 0.0
        %855 = vmatpush1.msra.mxu0 %v706
        %856 = vmatprep.subr.mxu0 0.0
        %857 = vmatpush1.msra.mxu0 %v705
        %858 = vmatprep.subr.mxu0 0.0
        %859 = vmatpush1.msra.mxu0 %v704
        %860 = vmatprep.subr.mxu0 0.0
        %861 = vmatpush2.msra.mxu0 0.0
        %862 = vmatprep.subr.mxu0 0.0
        %863 = vmatpush2.msra.mxu0 0.0
        %864 = vmatprep.subr.mxu0 0.0
        %865 = vmatpush2.msra.mxu0 0.0
        %866 = vmatprep.subr.mxu0 0.0
        %867 = vmatpush2.msra.mxu0 0.0
        %868 = vmatprep.subr.mxu0 0.0
        %869 = vmatpush2.msra.mxu0 0.0
        %870 = vmatprep.subr.mxu0 0.0
        %871 = vmatpush2.msra.mxu0 0.0
        %872 = vmatprep.subr.mxu0 0.0
        %873 = vmatpush2.msra.mxu0 0.0
        %874 = vmatprep.subr.mxu0 0.0
        %875 = vmatpush2.msra.mxu0 0.0
        %876 = vmatprep.subr.mxu0 0.0
        %877 = vmatpush2.msra.mxu0 0.0
        %878 = vmatprep.subr.mxu0 0.0
        %879 = vmatpush2.msra.mxu0 0.0
        %880 = vmatprep.subr.mxu0 0.0
        %881 = vmatpush2.msra.mxu0 0.0
        %882 = vmatprep.subr.mxu0 0.0
        %883 = vmatpush2.msra.mxu0 0.0
        %884 = vmatprep.subr.mxu0 0.0
        %885 = vmatpush2.msra.mxu0 0.0
        %886 = vmatprep.subr.mxu0 0.0
        %887 = vmatpush2.msra.mxu0 0.0
        %888 = vmatprep.subr.mxu0 0.0
        %889 = vmatpush2.msra.mxu0 0.0
        %890 = vmatprep.subr.mxu0 0.0
        %891 = vmatpush2.msra.mxu0 0.0
        %892 = vmatprep.mubr.f32.mxu0 0.0
        %893 = vmatmul.mubr.f32.gmra.mxu0 %v817
        %v894 = vpop.f32.mrf.mxu0
        %v895 = vadd.f32 %v798, %v894
        %v896 = vpop.f32.mrf.mxu0
        %897 = vmatprep.mubr.f32.mxu0 0.0
        %898 = vmatmul.mubr.f32.gmra.mxu0 %v820
        %v899 = vpop.f32.mrf.mxu0
        %v900 = vadd.f32 %v803, %v899
        %v901 = vpop.f32.mrf.mxu0
        %902 = vmatprep.mubr.f32.mxu0 0.0
        %903 = vmatmul.mubr.f32.gmra.mxu0 %v823
        %v904 = vpop.f32.mrf.mxu0
        %v905 = vadd.f32 %v808, %v904
        %v906 = vpop.f32.mrf.mxu0
        %907 = vmatprep.mubr.f32.mxu0 0.0
        %908 = vmatmul.mubr.f32.gmra.mxu0 %v826
        %v909 = vpop.f32.mrf.mxu0
        %v910 = vadd.f32 %v813, %v909
        %v911 = vpop.f32.mrf.mxu0
        %912 = vdwg.mxu0
        %vm913 = vcmp.ge.f32.partialorder %v895, 0.0
        %vm914 = vcmp.ge.f32.partialorder %v900, 0.0
        %vm915 = vcmp.ge.f32.partialorder %v905, 0.0
        %vm916 = vcmp.ge.f32.partialorder %v910, 0.0
        %v917 = vmul.f32 %v895, 0.01
        %v918 = vmul.f32 %v900, 0.01
        %v919 = vmul.f32 %v905, 0.01
        %v920 = vmul.f32 %v910, 0.01
        %v921 = vsel %vm913, %v895, %v917
        %v922 = vsel %vm914, %v900, %v918
        %v923 = vsel %vm915, %v905, %v919
        %v924 = vsel %vm916, %v910, %v920
        %v925 = vlaneseq
        %v926 = vshrl.u32 %v925, 7
        %v927 = vsub.s32 0, %v926
        %v928 = vrot.slane %v709, %v927
        %v929 = vmul.f32 %v921, %v928
        %v930 = vmul.f32 %v922, %v928
        %v931 = vmul.f32 %v923, %v928
        %v932 = vmul.f32 %v924, %v928
        %933 = vst [vmem:[%s274] sm:$0xff] %v929
        %934 = vst [vmem:[%s274 + $0x8] sm:$0xff] %v930
        %935 = vst [vmem:[%s274 + $0x10] sm:$0xff] %v931
        %936 = vst [vmem:[%s274 + $0x18] sm:$0xff] %v932
        %s937 = sand.u32 %s161, 1
        %s938 = scalar_lea.sflag [#allocation3], %s937
        %s939 = sand.u32 %s161, 1
        %s940 = smul.addr %s939, 32
        %s941 = scalar_lea.vmem [#allocation5], %s940
        // Predicated region
        $region45: #{tpu_custom_call.1} parent=39 // pred_check
          %p942 = pneg %p171
        $region46: #{tpu_custom_call.1} parent=39 // pred_check_branch
          %944 = sbr.rel (%p942) target = $region48
        $region47: #{tpu_custom_call.1} parent=39 // pred_region
          %s946 = ssub.s32 512, 512
          %947 = vsyncadd %s938, %s946
          %s948 = smul.addr %s24, 4
          %s949 = sadd.s32 %s25, %s948
          %s950 = smul.addr %s949, 128
          %s951 = scalar_lea.hbm %s5, %s950
          %s952 = sshll.u32 %s941, 4
          %s953 = int_to_ptr.vmem [resolvable:$true] %s952
          %958 = dma.vmem_to_hbm [thread:$0]  %s953, 512, %s951, %s938, 128, 128, 8
        $region48: #{tpu_custom_call.1} parent=39 // pred_fallthru
          _
      $region40: #{tpu_custom_call.1} parent=5 // pred_fallthru
        _
      %p959 = scmp.le.s32.totalorder 2, %s15
      // Predicated region
      $region49: #{tpu_custom_call.1} parent=5 // pred_check
        %p960 = pneg %p959
      $region50: #{tpu_custom_call.1} parent=5 // pred_check_branch
        %962 = sbr.rel (%p960) target = $region52
      $region51: #{tpu_custom_call.1} parent=5 // pred_region
        %s963 = ssub.s32 %s15, 2
        // Predicated region
        $region53: #{tpu_custom_call.1} parent=51 // pred_check
          %p964 = pneg %p177
        $region54: #{tpu_custom_call.1} parent=51 // pred_check_branch
          %966 = sbr.rel (%p964) target = $region56
        $region55: #{tpu_custom_call.1} parent=51 // pred_region
          %s967 = sand.u32 %s162, 1
          %s968 = scalar_lea.sflag [#allocation3], %s967
          %s969 = sand.u32 %s162, 1
          %s970 = smul.addr %s969, 32
          %s971 = scalar_lea.vmem [#allocation5], %s970
          %972 = dma.done %s968, 512
        $region56: #{tpu_custom_call.1} parent=51 // pred_fallthru
          _
      $region52: #{tpu_custom_call.1} parent=5 // pred_fallthru
        _
    $region6: #{tpu_custom_call.1} parent=1 // loop_footer
      %s19 = sadd.s32 1, %s15
    $region7: #{tpu_custom_call.1} parent=1 // loop_footer_branch
      %14 = sbr.rel target = $region3
    $region8: #{tpu_custom_call.1} parent=1 // loop_exit
      _
    %973 = vsyncpa [#allocation3], 1
    %s974 = scalar_lea.sflag [#allocation3], 1
    %975 = vsyncpa %s974, 1
    %976 = vsyncpa [#allocation4], 1
    %s977 = scalar_lea.sflag [#allocation4], 1
    %978 = vsyncpa %s977, 1

</llo_original>
